<compile_context>
chip_gen: v7x
topology: tpu7x:2x2x1
jax: 0.10.0
libtpu: 0.0.40
codegen_flags: <defaults>
</compile_context>

<pallas_src>
import math

import jax
import jax.numpy as jnp
from jax import lax
from jax.experimental import pallas as pl
from jax.experimental.pallas import tpu as pltpu


def _fsa_kernel(x_ref, wqkv_ref, baqkv_ref, wo_ref, baout_ref, out_ref):
    # x_ref block: (b_block, F, T*C) lane-dense, f32.
    Bb, F, TC = x_ref.shape
    D = wo_ref.shape[0]                    # T * (C // 2)  == C*T//2
    scale = 1.0 / math.sqrt(float(D))

    x = x_ref[...]                                           # (Bb, F, TC) f32 (residual)
    x2 = x.reshape(Bb * F, TC)                               # free: lane dim unchanged

    # Fused Q/K/V 1x1 conv (+folded BN) + PReLU: ONE matmul, M = Bb*F rows.
    # bf16 operands, f32 accumulation; bias/PReLU in f32.
    qkv = jnp.dot(x2.astype(jnp.bfloat16), wqkv_ref[...],
                  preferred_element_type=jnp.float32)        # (Bb*F, 3D)
    ba = baqkv_ref[...]                                      # (2, 3D) f32: [bias; alpha]
    qkv = qkv + ba[0:1, :]
    qkv = jnp.where(qkv >= 0, qkv, ba[1:2, :] * qkv)

    q = qkv[:, :D].reshape(Bb, F, D).astype(jnp.bfloat16)
    k = qkv[:, D:2 * D].reshape(Bb, F, D).astype(jnp.bfloat16)
    v = qkv[:, 2 * D:].reshape(Bb, F, D).astype(jnp.bfloat16)

    # Per-batch frequency attention (batched MXU matmuls, f32 accumulate).
    s = jnp.einsum('bfd,bgd->bfg', q, k,
                   preferred_element_type=jnp.float32) * scale      # (Bb, F, F)

    # softmax over the last (frequency) axis, f32; reciprocal on the EUP.
    m = jnp.max(s, axis=-1, keepdims=True)
    e = jnp.exp(s - m)
    attn = e * pl.reciprocal(jnp.sum(e, axis=-1, keepdims=True), approx=True)

    logits = jnp.einsum('bfg,bgd->bfd', attn.astype(jnp.bfloat16), v,
                        preferred_element_type=jnp.float32)          # (Bb, F, D)

    # Output 1x1 conv (+folded BN) + PReLU: ONE matmul, M = Bb*F rows; residual.
    y = jnp.dot(logits.reshape(Bb * F, D).astype(jnp.bfloat16), wo_ref[...],
                preferred_element_type=jnp.float32)                  # (Bb*F, TC)
    bo = baout_ref[...]                                              # (2, TC) f32
    y = y + bo[0:1, :]
    y = jnp.where(y >= 0, y, bo[1:2, :] * y)

    out_ref[...] = (y.reshape(Bb, F, TC) + x).astype(out_ref.dtype)  # lane-dense store


def _pick_b_block(B, F):
    """Rows per grid step: aim M = b_block*F toward 256 (v6e/v7x MXU rows)
    while keeping >= 2 'parallel' grid steps when B >= 2 (two v7x TCs)."""
    if B <= 1:
        return 1
    target = max(1, 256 // max(F, 1))
    b_block = max(1, min(B // 2, target))
    while B % b_block:          # need a divisor of B
        b_block -= 1
    return b_block


def frequency_self_attention(x_nchw, params, b_block=None):
    """x_nchw: (B, C, T, F) float32, same convention as the PyTorch module."""
    B, C, T, F = x_nchw.shape
    C2 = C // 2
    D = T * C2                       # flattened q/k/v feature dim (== C*T//2)
    TC = T * C

    if b_block is None:
        b_block = _pick_b_block(B, F)
    assert B % b_block == 0

    (wq, bq, aq), (wk, bk, ak), (wv, bv, av), (wo, bo, ao) = params
    eye = jnp.eye(T, dtype=jnp.float32)

    # Lift the per-channel 1x1 convs onto the flattened (t, c) axis:
    # y_flat = x_flat @ kron(I_T, W)  (block-diagonal weight), built once here.
    # Weights as bf16 (MXU operands + half the weight DMA bytes).
    w_qkv = jnp.concatenate(
        [jnp.kron(eye, wq), jnp.kron(eye, wk), jnp.kron(eye, wv)],
        axis=1).astype(jnp.bfloat16)                                    # (TC, 3D)
    ones_d = jnp.ones((D,), jnp.float32)
    ba_qkv = jnp.stack(
        [jnp.concatenate([jnp.tile(bq, T), jnp.tile(bk, T), jnp.tile(bv, T)]),
         jnp.concatenate([aq * ones_d, ak * ones_d, av * ones_d])])     # (2, 3D)

    w_out = jnp.kron(eye, wo).astype(jnp.bfloat16)                      # (D, TC)
    ba_out = jnp.stack([jnp.tile(bo, T),
                        ao * jnp.ones((TC,), jnp.float32)])             # (2, TC)

    # Lane-dense layout: x_flat[b, f, t*C + c] = x[b, c, t, f].
    x_flat = jnp.transpose(x_nchw, (0, 3, 2, 1)).reshape(B, F, TC)

    def whole(shape):
        return pl.BlockSpec(shape, lambda i: (0, 0))

    out = pl.pallas_call(
        _fsa_kernel,
        out_shape=jax.ShapeDtypeStruct((B, F, TC), jnp.float32),
        grid_spec=pltpu.PrefetchScalarGridSpec(
            num_scalar_prefetch=0,
            grid=(B // b_block,),
            in_specs=[pl.BlockSpec((b_block, F, TC), lambda i: (i, 0, 0)),
                      whole((TC, 3 * D)),
                      whole((2, 3 * D)),
                      whole((D, TC)),
                      whole((2, TC))],
            out_specs=pl.BlockSpec((b_block, F, TC), lambda i: (i, 0, 0)),
        ),
        compiler_params=pltpu.CompilerParams(
            dimension_semantics=("parallel",),
            # explicit budget: fits v5e/v6e scoped VMEM and stays well below
            # v7x's 64 MiB physical (toy tiles here are only a few 10s of KB).
            vmem_limit_bytes=32 * 1024 * 1024),
    )(x_flat, w_qkv, ba_qkv, w_out, ba_out)

    return jnp.transpose(out.reshape(B, F, T, C), (0, 3, 2, 1))         # (B, C, T, F)


def make_branch_params(key, cin, cout, alpha):
    """Deterministic Conv2d(1x1) + BatchNorm2d (eval) + PReLU params, BN folded."""
    eps = 1e-5
    kk = jax.random.split(key, 6)
    W = 0.3 * jax.random.normal(kk[0], (cout, cin), jnp.float32)          # conv weight
    b = 0.1 * jax.random.normal(kk[1], (cout,), jnp.float32)              # conv bias
    gamma = 1.0 + 0.1 * jax.random.normal(kk[2], (cout,), jnp.float32)    # BN weight
    beta = 0.1 * jax.random.normal(kk[3], (cout,), jnp.float32)           # BN bias
    mean = 0.1 * jax.random.normal(kk[4], (cout,), jnp.float32)           # running_mean
    var = 1.0 + 0.1 * jax.random.uniform(kk[5], (cout,), jnp.float32)     # running_var
    s = gamma / jnp.sqrt(var + eps)
    W_eff = (W * s[:, None]).astype(jnp.float32)
    b_eff = (s * (b - mean) + beta).astype(jnp.float32)
    return (W_eff.T,                                                      # (cin, cout)
            b_eff,                                                        # (cout,)
            jnp.float32(alpha))                                           # scalar


def reference(x, params):
    """Pure-JAX (f32) transcription of the PyTorch forward (BN eval, folded)."""
    B, C, T, F = x.shape
    C2 = C // 2
    (wq, bq, aq), (wk, bk, ak), (wv, bv, av), (wo, bo, ao) = params

    def pconv(x4, wt, b, a):
        y = jnp.einsum('bctf,cd->bdtf', x4, wt) + b.reshape(1, -1, 1, 1)
        return jnp.where(y >= 0, y, a * y)

    q = pconv(x, wq, bq, aq)
    k = pconv(x, wk, bk, ak)
    v = pconv(x, wv, bv, av)
    D = C * T // 2
    qf = jnp.transpose(q, (0, 3, 1, 2)).reshape(B, F, D)
    kf = jnp.transpose(k, (0, 3, 1, 2)).reshape(B, F, D)
    vf = jnp.transpose(v, (0, 3, 1, 2)).reshape(B, F, D)
    s = jnp.einsum('bfd,bgd->bfg', qf, kf) / math.sqrt(D)
    attn = jax.nn.softmax(s, axis=-1)
    lg = jnp.einsum('bfg,bgd->bfd', attn, vf).reshape(B, F, C2, T)
    lg = jnp.transpose(lg, (0, 2, 3, 1))                                  # (B, C2, T, F)
    return pconv(lg, wo, bo, ao) + x


if __name__ == "__main__":
    B, C, T, F = 8, 8, 8, 16       # num_channels = 8
    key = jax.random.PRNGKey(0)
    kx, kq, kk_, kv, ko = jax.random.split(key, 5)

    x = jax.random.normal(kx, (B, C, T, F), jnp.float32)
    params = (
        make_branch_params(kq, C, C // 2, 0.25),
        make_branch_params(kk_, C, C // 2, 0.20),
        make_branch_params(kv, C, C // 2, 0.30),
        make_branch_params(ko, C // 2, C, 0.15),
    )

    y = frequency_self_attention(x, params)
    jax.block_until_ready(y)

    y_ref = reference(x, params)
    assert y.shape == (B, C, T, F)
    # bf16 MXU operands (projections + attention) with f32 accumulation and an
    # approx EUP reciprocal in the softmax -> tolerance relative to peak |y_ref|.
    max_err = float(jnp.max(jnp.abs(y - y_ref)))
    ref_scale = float(jnp.max(jnp.abs(y_ref)))
    assert max_err <= 4e-2 * max(ref_scale, 1.0), \
        f"max abs err {max_err} (ref scale {ref_scale})"
    print("KERNEL_OK")
</pallas_src>

<mosaic_0001>
module attributes {stable_mosaic.version = 11 : i64} {
  func.func @_fsa_kernel(%arg0: i32, %arg1: memref<4x16x64xf32, #tpu.memory_space<vmem>>, %arg2: memref<64x96xbf16, #tpu.memory_space<vmem>>, %arg3: memref<2x96xf32, #tpu.memory_space<vmem>>, %arg4: memref<32x64xbf16, #tpu.memory_space<vmem>>, %arg5: memref<2x64xf32, #tpu.memory_space<vmem>>, %arg6: memref<4x16x64xf32, #tpu.memory_space<vmem>>) attributes {dimension_semantics = [#tpu.dimension_semantics<parallel>], iteration_bounds = array<i64: 2>, scalar_prefetch = 0 : i64, scratch_operands = 0 : i64, tpu.core_type = #tpu.core_type<tc>, window_params = [{transform_indices = @transform_0, window_bounds = array<i64: 4, 16, 64>}, {pipeline_mode = #tpu.pipeline_mode<synchronous>, transform_indices = @transform_1, window_bounds = array<i64: 64, 96>}, {pipeline_mode = #tpu.pipeline_mode<synchronous>, transform_indices = @transform_2, window_bounds = array<i64: 2, 96>}, {pipeline_mode = #tpu.pipeline_mode<synchronous>, transform_indices = @transform_3, window_bounds = array<i64: 32, 64>}, {pipeline_mode = #tpu.pipeline_mode<synchronous>, transform_indices = @transform_4, window_bounds = array<i64: 2, 64>}, {transform_indices = @transform_5, window_bounds = array<i64: 4, 16, 64>}]} {
    %c0 = arith.constant 0 : index
    %c0_0 = arith.constant 0 : index
    %c0_1 = arith.constant 0 : index
    %0 = vector.load %arg1[%c0, %c0_0, %c0_1] : memref<4x16x64xf32, #tpu.memory_space<vmem>>, vector<4x16x64xf32>
    %1 = vector.shape_cast %0 : vector<4x16x64xf32> to vector<64x64xf32>
    %2 = arith.truncf %1 : vector<64x64xf32> to vector<64x64xbf16>
    %c0_2 = arith.constant 0 : index
    %c0_3 = arith.constant 0 : index
    %3 = vector.load %arg2[%c0_2, %c0_3] : memref<64x96xbf16, #tpu.memory_space<vmem>>, vector<64x96xbf16>
    %cst = arith.constant dense<0.000000e+00> : vector<64x96xf32>
    %4 = tpu.matmul %2, %3, %cst {dimension_numbers = #tpu.dot_dimension_numbers<[1], [0], [0], [1], [0, 0, 1, 1], [], []>} : vector<64x64xbf16>, vector<64x96xbf16>, vector<64x96xf32> -> vector<64x96xf32>
    %c0_4 = arith.constant 0 : index
    %c0_5 = arith.constant 0 : index
    %5 = vector.load %arg3[%c0_4, %c0_5] : memref<2x96xf32, #tpu.memory_space<vmem>>, vector<2x96xf32>
    %6 = vector.extract_strided_slice %5 {offsets = [0, 0], sizes = [1, 96], strides = [1, 1]} : vector<2x96xf32> to vector<1x96xf32>
    %7 = vector.broadcast %6 : vector<1x96xf32> to vector<64x96xf32>
    %8 = arith.addf %4, %7 : vector<64x96xf32>
    %cst_6 = arith.constant 0.000000e+00 : f32
    %9 = vector.broadcast %cst_6 : f32 to vector<64x96xf32>
    %10 = arith.cmpf oge, %8, %9 : vector<64x96xf32>
    %11 = vector.extract_strided_slice %5 {offsets = [1, 0], sizes = [1, 96], strides = [1, 1]} : vector<2x96xf32> to vector<1x96xf32>
    %12 = vector.broadcast %11 : vector<1x96xf32> to vector<64x96xf32>
    %13 = arith.mulf %12, %8 : vector<64x96xf32>
    %14 = arith.select %10, %8, %13 : vector<64x96xi1>, vector<64x96xf32>
    %15 = vector.extract_strided_slice %14 {offsets = [0, 0], sizes = [64, 32], strides = [1, 1]} : vector<64x96xf32> to vector<64x32xf32>
    %16 = vector.shape_cast %15 : vector<64x32xf32> to vector<4x16x32xf32>
    %17 = arith.truncf %16 : vector<4x16x32xf32> to vector<4x16x32xbf16>
    %18 = vector.extract_strided_slice %14 {offsets = [0, 32], sizes = [64, 32], strides = [1, 1]} : vector<64x96xf32> to vector<64x32xf32>
    %19 = vector.shape_cast %18 : vector<64x32xf32> to vector<4x16x32xf32>
    %20 = arith.truncf %19 : vector<4x16x32xf32> to vector<4x16x32xbf16>
    %21 = vector.extract_strided_slice %14 {offsets = [0, 64], sizes = [64, 32], strides = [1, 1]} : vector<64x96xf32> to vector<64x32xf32>
    %22 = vector.shape_cast %21 : vector<64x32xf32> to vector<4x16x32xf32>
    %23 = arith.truncf %22 : vector<4x16x32xf32> to vector<4x16x32xbf16>
    "tpu.trace_start"() <{level = 10 : i32, message = "bfd,bgd->bfg"}> : () -> ()
    %cst_7 = arith.constant dense<0.000000e+00> : vector<4x16x16xf32>
    %24 = tpu.matmul %17, %20, %cst_7 {dimension_numbers = #tpu.dot_dimension_numbers<[2], [2], [1], [1], [0, 0, 0, 1, 1, 1], [0], [0]>} : vector<4x16x32xbf16>, vector<4x16x32xbf16>, vector<4x16x16xf32> -> vector<4x16x16xf32>
    "tpu.trace_stop"() : () -> ()
    %cst_8 = arith.constant 0.176776692 : f32
    %25 = vector.broadcast %cst_8 : f32 to vector<4x16x16xf32>
    %26 = arith.mulf %24, %25 : vector<4x16x16xf32>
    %cst_9 = arith.constant dense<0xFF800000> : vector<4x16xf32>
    %27 = vector.multi_reduction <maximumf>, %26, %cst_9 [2] : vector<4x16x16xf32> to vector<4x16xf32>
    %28 = vector.shape_cast %27 : vector<4x16xf32> to vector<4x16x1xf32>
    %29 = vector.broadcast %28 : vector<4x16x1xf32> to vector<4x16x16xf32>
    %30 = arith.subf %26, %29 : vector<4x16x16xf32>
    %31 = math.exp %30 : vector<4x16x16xf32>
    %cst_10 = arith.constant dense<0.000000e+00> : vector<4x16xf32>
    %32 = vector.multi_reduction <add>, %31, %cst_10 [2] : vector<4x16x16xf32> to vector<4x16xf32>
    %33 = vector.shape_cast %32 : vector<4x16xf32> to vector<4x16x1xf32>
    %34 = tpu.reciprocal %33 {approx = true} : vector<4x16x1xf32> -> vector<4x16x1xf32>
    %35 = vector.broadcast %34 : vector<4x16x1xf32> to vector<4x16x16xf32>
    %36 = arith.mulf %31, %35 : vector<4x16x16xf32>
    %37 = arith.truncf %36 : vector<4x16x16xf32> to vector<4x16x16xbf16>
    "tpu.trace_start"() <{level = 10 : i32, message = "bfg,bgd->bfd"}> : () -> ()
    %cst_11 = arith.constant dense<0.000000e+00> : vector<4x16x32xf32>
    %38 = tpu.matmul %37, %23, %cst_11 {dimension_numbers = #tpu.dot_dimension_numbers<[2], [1], [1], [2], [0, 0, 0, 1, 1, 2], [0], [0]>} : vector<4x16x16xbf16>, vector<4x16x32xbf16>, vector<4x16x32xf32> -> vector<4x16x32xf32>
    "tpu.trace_stop"() : () -> ()
    %39 = vector.shape_cast %38 : vector<4x16x32xf32> to vector<64x32xf32>
    %40 = arith.truncf %39 : vector<64x32xf32> to vector<64x32xbf16>
    %c0_12 = arith.constant 0 : index
    %c0_13 = arith.constant 0 : index
    %41 = vector.load %arg4[%c0_12, %c0_13] : memref<32x64xbf16, #tpu.memory_space<vmem>>, vector<32x64xbf16>
    %cst_14 = arith.constant dense<0.000000e+00> : vector<64x64xf32>
    %42 = tpu.matmul %40, %41, %cst_14 {dimension_numbers = #tpu.dot_dimension_numbers<[1], [0], [0], [1], [0, 0, 1, 1], [], []>} : vector<64x32xbf16>, vector<32x64xbf16>, vector<64x64xf32> -> vector<64x64xf32>
    %c0_15 = arith.constant 0 : index
    %c0_16 = arith.constant 0 : index
    %43 = vector.load %arg5[%c0_15, %c0_16] : memref<2x64xf32, #tpu.memory_space<vmem>>, vector<2x64xf32>
    %44 = vector.extract_strided_slice %43 {offsets = [0, 0], sizes = [1, 64], strides = [1, 1]} : vector<2x64xf32> to vector<1x64xf32>
    %45 = vector.broadcast %44 : vector<1x64xf32> to vector<64x64xf32>
    %46 = arith.addf %42, %45 : vector<64x64xf32>
    %cst_17 = arith.constant 0.000000e+00 : f32
    %47 = vector.broadcast %cst_17 : f32 to vector<64x64xf32>
    %48 = arith.cmpf oge, %46, %47 : vector<64x64xf32>
    %49 = vector.extract_strided_slice %43 {offsets = [1, 0], sizes = [1, 64], strides = [1, 1]} : vector<2x64xf32> to vector<1x64xf32>
    %50 = vector.broadcast %49 : vector<1x64xf32> to vector<64x64xf32>
    %51 = arith.mulf %50, %46 : vector<64x64xf32>
    %52 = arith.select %48, %46, %51 : vector<64x64xi1>, vector<64x64xf32>
    %53 = vector.shape_cast %52 : vector<64x64xf32> to vector<4x16x64xf32>
    %54 = arith.addf %53, %0 : vector<4x16x64xf32>
    %c0_18 = arith.constant 0 : index
    %c0_19 = arith.constant 0 : index
    %c0_20 = arith.constant 0 : index
    %55 = vector.load %arg6[%c0_18, %c0_19, %c0_20] : memref<4x16x64xf32, #tpu.memory_space<vmem>>, vector<4x16x64xf32>
    tpu.vector_store %arg6[%c0_18, %c0_19, %c0_20], %54 {strides = array<i32>} : memref<4x16x64xf32, #tpu.memory_space<vmem>>, vector<4x16x64xf32>,
    return
  }
  func.func @transform_0(%arg0: i32) -> (i32, i32, i32) {
    %c0_i32 = arith.constant 0 : i32
    %c0_i32_0 = arith.constant 0 : i32
    %c0_i32_1 = arith.constant 0 : i32
    return %arg0, %c0_i32, %c0_i32_0 : i32, i32, i32
  }
  func.func @transform_1(%arg0: i32) -> (i32, i32) {
    %c0_i32 = arith.constant 0 : i32
    %c0_i32_0 = arith.constant 0 : i32
    %c0_i32_1 = arith.constant 0 : i32
    return %c0_i32, %c0_i32_0 : i32, i32
  }
  func.func @transform_2(%arg0: i32) -> (i32, i32) {
    %c0_i32 = arith.constant 0 : i32
    %c0_i32_0 = arith.constant 0 : i32
    %c0_i32_1 = arith.constant 0 : i32
    return %c0_i32, %c0_i32_0 : i32, i32
  }
  func.func @transform_3(%arg0: i32) -> (i32, i32) {
    %c0_i32 = arith.constant 0 : i32
    %c0_i32_0 = arith.constant 0 : i32
    %c0_i32_1 = arith.constant 0 : i32
    return %c0_i32, %c0_i32_0 : i32, i32
  }
  func.func @transform_4(%arg0: i32) -> (i32, i32) {
    %c0_i32 = arith.constant 0 : i32
    %c0_i32_0 = arith.constant 0 : i32
    %c0_i32_1 = arith.constant 0 : i32
    return %c0_i32, %c0_i32_0 : i32, i32
  }
  func.func @transform_5(%arg0: i32) -> (i32, i32, i32) {
    %c0_i32 = arith.constant 0 : i32
    %c0_i32_0 = arith.constant 0 : i32
    %c0_i32_1 = arith.constant 0 : i32
    return %arg0, %c0_i32, %c0_i32_0 : i32, i32, i32
  }
}

</mosaic_0001>

<llo_original>
// kernel: tpu_custom_call.1
$region0: #{tpu_custom_call.1}
  #allocation0 [shape = 'u32[]', space=smem, size = 0x4, offset = 0x4, fixed_abs, tag = 'smem constant byte address 0x4 - core index']
  #allocation1 [shape = 'u32[144,128]{1,0:T(1,128)}', space=vmem, size = 0x12000, scoped, tag = 'internal scratch']
  %s0 = inlined_call_operand.hbm [shape: f32[8,16,64], index: 0, kind: input, shape index: {}]
  %s1 = inlined_call_operand.hbm [shape: bf16[64,96], index: 1, kind: input, shape index: {}]
  %s2 = inlined_call_operand.vmem [shape: f32[2,96], index: 2, kind: input, shape index: {}]
  %s3 = inlined_call_operand.hbm [shape: bf16[32,64], index: 3, kind: input, shape index: {}]
  %s4 = inlined_call_operand.vmem [shape: f32[2,64], index: 4, kind: input, shape index: {}]
  %s5 = inlined_call_operand.hbm [shape: f32[8,16,64], index: 5, kind: output, shape index: {}]
  %s6 = sld [smem:[#allocation0]]
  $region65: #{tpu_custom_call.1} parent=0
    _
  %s8 = ssub.s32 1, %s6
  %s9 = scalar_select 0, %s8, %s6
  $region1: #{tpu_custom_call.1} parent=0
    #allocation2 [shape = 'u8[65536]{0}', space=vmem, size = 0x10000, scoped, tag = 'input window, operand 0']
    #allocation3 [shape = 's32[2]{0}', space=sflag, size = 0x8, scoped, tag = 'scoped memory for tpu_custom_call.1']
    #allocation4 [shape = 's32[2]{0}', space=sflag, size = 0x8, scoped, tag = 'scoped memory for tpu_custom_call.1']
    #allocation5 [shape = 'u8[16384]{0}', space=vmem, size = 0x4000, scoped, tag = 'input window, operand 1, single buffered']
    #allocation6 [shape = 's32[1]{0}', space=sflag, size = 0x4, scoped, tag = 'scoped memory for tpu_custom_call.1']
    #allocation7 [shape = 'u8[8192]{0}', space=vmem, size = 0x2000, scoped, tag = 'input window, operand 3, single buffered']
    #allocation8 [shape = 'u8[65536]{0}', space=vmem, size = 0x10000, scoped, tag = 'output window, operand 0']
    %10 = vsyncpa [#allocation3], 0
    %s11 = scalar_lea.sflag [#allocation3], 1
    %12 = vsyncpa %s11, 0
    %13 = vsyncpa [#allocation6], 0
    %14 = vsyncpa [#allocation4], 0
    %s15 = scalar_lea.sflag [#allocation4], 1
    %16 = vsyncpa %s15, 0
    loop: start=0, step=1, limit=4
    $region2: #{tpu_custom_call.1} parent=1 // loop_pre_header
      _
    $region3: #{tpu_custom_call.1} parent=1 // loop_header
      %s18 = sphi 0, %s22
      %p19 = scmp.ge.s32.totalorder %s18, 4
      %s28 = sphi 0, %s30
      %s31 = sphi 0, %s28
      %s32 = sphi 0, %s31
      %s48 = sphi 0, %s32
      %s52 = sphi 0, %s52
      %s54 = sphi 0, %s52
      %s55 = sphi 0, %s54
      %s69 = sphi 0, %s55
      %s73 = sphi 0, %s73
      %s75 = sphi 0, %s73
      %s76 = sphi 0, %s75
      %s90 = sphi 0, %s76
      %s94 = sphi 0, %s94
      %s96 = sphi 0, %s94
      %s97 = sphi 0, %s96
      %s111 = sphi 0, %s97
      %s115 = sphi 0, %s115
      %s117 = sphi 0, %s115
      %s118 = sphi 0, %s117
      %s132 = sphi 0, %s118
      %s138 = sphi 0, %s140
      %s141 = sphi 0, %s138
      %s142 = sphi 0, %s141
      %s158 = sphi 0, %s142
    $region4: #{tpu_custom_call.1} parent=1 // loop_header_branch
      %21 = sbr.rel (%p19) target = $region8
    $region5: #{tpu_custom_call.1} parent=1 // loop_body
      %s23 = ssub.s32 %s18, 1
      %s24 = ssub.s32 %s18, 2
      %s25 = sadd.s32 %s18, 1
      %s26 = ssub.s32 %s18, %s25
      %p27 = scmp.eq.s32.totalorder %s26, 0
      %s29 = sadd.s32 %s28, 1
      %s30 = scalar_select %p27, %s28, %s29
      %p33 = pneg %p27
      %p34 = scmp.eq.s32.totalorder %s18, 1
      %p35 = por %p33, %p34
      %p36 = scmp.ne.s32.totalorder %s28, %s31
      %p37 = scmp.eq.s32.totalorder %s18, 0
      %p38 = por %p36, %p37
      %p39 = scmp.ne.s32.totalorder %s28, %s31
      %p40 = scmp.eq.s32.totalorder %s23, 1
      %p41 = por %p39, %p40
      %p42 = scmp.ne.s32.totalorder %s31, %s32
      %p43 = scmp.eq.s32.totalorder %s23, 0
      %p44 = por %p42, %p43
      %p45 = scmp.ne.s32.totalorder %s31, %s32
      %p46 = scmp.eq.s32.totalorder %s24, 1
      %p47 = por %p45, %p46
      %p49 = scmp.ne.s32.totalorder %s32, %s48
      %p50 = scmp.eq.s32.totalorder %s24, 0
      %p51 = por %p49, %p50
      %s53 = sadd.s32 %s52, 1
      %p56 = scmp.eq.s32.totalorder %s18, 1
      %p57 = scmp.ne.s32.totalorder %s52, %s54
      %p58 = scmp.eq.s32.totalorder %s18, 0
      %p59 = por %p57, %p58
      %p60 = scmp.ne.s32.totalorder %s52, %s54
      %p61 = scmp.eq.s32.totalorder %s23, 1
      %p62 = por %p60, %p61
      %p63 = scmp.ne.s32.totalorder %s54, %s55
      %p64 = scmp.eq.s32.totalorder %s23, 0
      %p65 = por %p63, %p64
      %p66 = scmp.ne.s32.totalorder %s54, %s55
      %p67 = scmp.eq.s32.totalorder %s24, 1
      %p68 = por %p66, %p67
      %p70 = scmp.ne.s32.totalorder %s55, %s69
      %p71 = scmp.eq.s32.totalorder %s24, 0
      %p72 = por %p70, %p71
      %s74 = sadd.s32 %s73, 1
      %p77 = scmp.eq.s32.totalorder %s18, 1
      %p78 = scmp.ne.s32.totalorder %s73, %s75
      %p79 = scmp.eq.s32.totalorder %s18, 0
      %p80 = por %p78, %p79
      %p81 = scmp.ne.s32.totalorder %s73, %s75
      %p82 = scmp.eq.s32.totalorder %s23, 1
      %p83 = por %p81, %p82
      %p84 = scmp.ne.s32.totalorder %s75, %s76
      %p85 = scmp.eq.s32.totalorder %s23, 0
      %p86 = por %p84, %p85
      %p87 = scmp.ne.s32.totalorder %s75, %s76
      %p88 = scmp.eq.s32.totalorder %s24, 1
      %p89 = por %p87, %p88
      %p91 = scmp.ne.s32.totalorder %s76, %s90
      %p92 = scmp.eq.s32.totalorder %s24, 0
      %p93 = por %p91, %p92
      %s95 = sadd.s32 %s94, 1
      %p98 = scmp.eq.s32.totalorder %s18, 1
      %p99 = scmp.ne.s32.totalorder %s94, %s96
      %p100 = scmp.eq.s32.totalorder %s18, 0
      %p101 = por %p99, %p100
      %p102 = scmp.ne.s32.totalorder %s94, %s96
      %p103 = scmp.eq.s32.totalorder %s23, 1
      %p104 = por %p102, %p103
      %p105 = scmp.ne.s32.totalorder %s96, %s97
      %p106 = scmp.eq.s32.totalorder %s23, 0
      %p107 = por %p105, %p106
      %p108 = scmp.ne.s32.totalorder %s96, %s97
      %p109 = scmp.eq.s32.totalorder %s24, 1
      %p110 = por %p108, %p109
      %p112 = scmp.ne.s32.totalorder %s97, %s111
      %p113 = scmp.eq.s32.totalorder %s24, 0
      %p114 = por %p112, %p113
      %s116 = sadd.s32 %s115, 1
      %p119 = scmp.eq.s32.totalorder %s18, 1
      %p120 = scmp.ne.s32.totalorder %s115, %s117
      %p121 = scmp.eq.s32.totalorder %s18, 0
      %p122 = por %p120, %p121
      %p123 = scmp.ne.s32.totalorder %s115, %s117
      %p124 = scmp.eq.s32.totalorder %s23, 1
      %p125 = por %p123, %p124
      %p126 = scmp.ne.s32.totalorder %s117, %s118
      %p127 = scmp.eq.s32.totalorder %s23, 0
      %p128 = por %p126, %p127
      %p129 = scmp.ne.s32.totalorder %s117, %s118
      %p130 = scmp.eq.s32.totalorder %s24, 1
      %p131 = por %p129, %p130
      %p133 = scmp.ne.s32.totalorder %s118, %s132
      %p134 = scmp.eq.s32.totalorder %s24, 0
      %p135 = por %p133, %p134
      %s136 = ssub.s32 %s18, %s25
      %p137 = scmp.eq.s32.totalorder %s136, 0
      %s139 = sadd.s32 %s138, 1
      %s140 = scalar_select %p137, %s138, %s139
      %p143 = pneg %p137
      %p144 = scmp.eq.s32.totalorder %s18, 1
      %p145 = por %p143, %p144
      %p146 = scmp.ne.s32.totalorder %s138, %s141
      %p147 = scmp.eq.s32.totalorder %s18, 0
      %p148 = por %p146, %p147
      %p149 = scmp.ne.s32.totalorder %s138, %s141
      %p150 = scmp.eq.s32.totalorder %s23, 1
      %p151 = por %p149, %p150
      %p152 = scmp.ne.s32.totalorder %s141, %s142
      %p153 = scmp.eq.s32.totalorder %s23, 0
      %p154 = por %p152, %p153
      %p155 = scmp.ne.s32.totalorder %s141, %s142
      %p156 = scmp.eq.s32.totalorder %s24, 1
      %p157 = por %p155, %p156
      %p159 = scmp.ne.s32.totalorder %s142, %s158
      %p160 = scmp.eq.s32.totalorder %s24, 0
      %p161 = por %p159, %p160
      %p162 = scmp.le.s32.totalorder 1, %s18
      %p163 = scmp.lt.s32.totalorder %s18, 3
      %p164 = pnand %p162, %p163
      %p165 = pneg %p164
      // Predicated region
      $region9: #{tpu_custom_call.1} parent=5 // pred_check
        _
      $region10: #{tpu_custom_call.1} parent=5 // pred_check_branch
        %167 = sbr.rel (%p164) target = $region12
      $region11: #{tpu_custom_call.1} parent=5 // pred_region
        %s168 = ssub.s32 %s18, 1
        // Predicated region
        $region13: #{tpu_custom_call.1} parent=11 // pred_check
          %p169 = pneg %p65
        $region14: #{tpu_custom_call.1} parent=11 // pred_check_branch
          %171 = sbr.rel (%p169) target = $region16
        $region15: #{tpu_custom_call.1} parent=11 // pred_region
          %s173 = ssub.s32 512, 512
          %174 = vsyncadd [#allocation6], %s173
          %s175 = sshll.u32 [#allocation5], 4
          %s176 = int_to_ptr.vmem [resolvable:$true] %s175
          %181 = dma.hbm_to_vmem [thread:$0]  %s1, 512, %s176, [#allocation6], 64, 64, 4
        $region16: #{tpu_custom_call.1} parent=11 // pred_fallthru
          _
        // Predicated region
        $region17: #{tpu_custom_call.1} parent=11 // pred_check
          %p182 = pneg %p86
        $region18: #{tpu_custom_call.1} parent=11 // pred_check_branch
          %184 = sbr.rel (%p182) target = $region20
        $region19: #{tpu_custom_call.1} parent=11 // pred_region
          _
        $region20: #{tpu_custom_call.1} parent=11 // pred_fallthru
          _
        // Predicated region
        $region21: #{tpu_custom_call.1} parent=11 // pred_check
          %p185 = pneg %p107
        $region22: #{tpu_custom_call.1} parent=11 // pred_check_branch
          %187 = sbr.rel (%p185) target = $region24
        $region23: #{tpu_custom_call.1} parent=11 // pred_region
          %s189 = ssub.s32 256, 256
          %190 = vsyncadd [#allocation6], %s189
          %s191 = sshll.u32 [#allocation7], 4
          %s192 = int_to_ptr.vmem [resolvable:$true] %s191
          %197 = dma.hbm_to_vmem [thread:$0]  %s3, 256, %s192, [#allocation6], 64, 64, 4
        $region24: #{tpu_custom_call.1} parent=11 // pred_fallthru
          _
        // Predicated region
        $region25: #{tpu_custom_call.1} parent=11 // pred_check
          %p198 = pneg %p128
        $region26: #{tpu_custom_call.1} parent=11 // pred_check_branch
          %200 = sbr.rel (%p198) target = $region28
        $region27: #{tpu_custom_call.1} parent=11 // pred_region
          _
        $region28: #{tpu_custom_call.1} parent=11 // pred_fallthru
          _
      $region12: #{tpu_custom_call.1} parent=5 // pred_fallthru
        _
      %p201 = scmp.lt.s32.totalorder %s18, 2
      // Predicated region
      $region29: #{tpu_custom_call.1} parent=5 // pred_check
        %p202 = pneg %p201
      $region30: #{tpu_custom_call.1} parent=5 // pred_check_branch
        %204 = sbr.rel (%p202) target = $region32
      $region31: #{tpu_custom_call.1} parent=5 // pred_region
        // Predicated region
        $region33: #{tpu_custom_call.1} parent=31 // pred_check
          %p205 = pneg %p38
        $region34: #{tpu_custom_call.1} parent=31 // pred_check_branch
          %207 = sbr.rel (%p205) target = $region36
        $region35: #{tpu_custom_call.1} parent=31 // pred_region
          %s208 = sand.u32 %s28, 1
          %s209 = scalar_lea.sflag [#allocation3], %s208
          %s210 = sand.u32 %s28, 1
          %s211 = smul.addr %s210, 64
          %s212 = scalar_lea.vmem [#allocation2], %s211
          %s213 = smul.u32 4, %s18
          %s215 = ssub.s32 1024, 1024
          %216 = vsyncadd %s209, %s215
          %s217 = smul.addr %s213, 2
          %s218 = smul.addr %s217, 128
          %s219 = scalar_lea.hbm %s0, %s218
          %s220 = sshll.u32 %s212, 4
          %s221 = int_to_ptr.vmem [resolvable:$true] %s220
          %226 = dma.hbm_to_vmem [thread:$0]  %s219, 1024, %s221, %s209, 128, 128, 8
        $region36: #{tpu_custom_call.1} parent=31 // pred_fallthru
          _
      $region32: #{tpu_custom_call.1} parent=5 // pred_fallthru
        _
      %p227 = scmp.le.s32.totalorder 1, %s18
      %p228 = scmp.lt.s32.totalorder %s18, 3
      %p229 = pnand %p227, %p228
      %p230 = pneg %p229
      // Predicated region
      $region37: #{tpu_custom_call.1} parent=5 // pred_check
        _
      $region38: #{tpu_custom_call.1} parent=5 // pred_check_branch
        %232 = sbr.rel (%p229) target = $region40
      $region39: #{tpu_custom_call.1} parent=5 // pred_region
        %s233 = ssub.s32 %s18, 1
        %s234 = sand.u32 %s31, 1
        %s235 = scalar_lea.sflag [#allocation3], %s234
        %s236 = sand.u32 %s31, 1
        %s237 = smul.addr %s236, 64
        %s238 = scalar_lea.vmem [#allocation2], %s237
        // Predicated region
        $region41: #{tpu_custom_call.1} parent=39 // pred_check
          %p239 = pneg %p44
        $region42: #{tpu_custom_call.1} parent=39 // pred_check_branch
          %241 = sbr.rel (%p239) target = $region44
        $region43: #{tpu_custom_call.1} parent=39 // pred_region
          %242 = dma.done %s235, 1024
        $region44: #{tpu_custom_call.1} parent=39 // pred_fallthru
          _
        // Predicated region
        $region45: #{tpu_custom_call.1} parent=39 // pred_check
          %p243 = pneg %p65
        $region46: #{tpu_custom_call.1} parent=39 // pred_check_branch
          %245 = sbr.rel (%p243) target = $region48
        $region47: #{tpu_custom_call.1} parent=39 // pred_region
          %246 = dma.done [#allocation6], 512
        $region48: #{tpu_custom_call.1} parent=39 // pred_fallthru
          _
        // Predicated region
        $region49: #{tpu_custom_call.1} parent=39 // pred_check
          %p247 = pneg %p107
        $region50: #{tpu_custom_call.1} parent=39 // pred_check_branch
          %249 = sbr.rel (%p247) target = $region52
        $region51: #{tpu_custom_call.1} parent=39 // pred_region
          %250 = dma.done [#allocation6], 256
        $region52: #{tpu_custom_call.1} parent=39 // pred_fallthru
          _
        %s251 = sand.u32 %s31, 1
        %s252 = scalar_lea.sflag [#allocation3], %s251
        %s253 = sand.u32 %s31, 1
        %s254 = smul.addr %s253, 64
        %s255 = scalar_lea.vmem [#allocation2], %s254
        %p256 = pneg %p44
        %p257 = pneg %p41
        %p258 = pneg %p65
        %p259 = pneg %p62
        %p260 = pneg %p86
        %p261 = pneg %p83
        %p262 = pneg %p107
        %p263 = pneg %p104
        %p264 = pneg %p128
        %p265 = pneg %p125
        %p266 = pneg %p154
        %p267 = pneg %p151
        %s268 = sand.u32 %s141, 1
        %s269 = scalar_lea.sflag [#allocation4], %s268
        %s270 = sand.u32 %s141, 1
        %s271 = smul.addr %s270, 64
        %s272 = scalar_lea.vmem [#allocation8], %s271
        %s273 = smul.u32 4, %s23
        %s274 = smul.u32 4, %s23
        %v276 = vld [vmem:[%s238] sm:$0xff]
        %v277 = vld [vmem:[%s238 + $0x8] sm:$0xff]
        %v278 = vld [vmem:[%s238 + $0x10] sm:$0xff]
        %v279 = vld [vmem:[%s238 + $0x18] sm:$0xff]
        %v280 = vld [vmem:[%s238 + $0x20] sm:$0xff]
        %v281 = vld [vmem:[%s238 + $0x28] sm:$0xff]
        %v282 = vld [vmem:[%s238 + $0x30] sm:$0xff]
        %v283 = vld [vmem:[%s238 + $0x38] sm:$0xff]
        %v284 = vpack.c.bf16 %v277, %v276
        %v285 = vpack.c.bf16 %v279, %v278
        %v286 = vpack.c.bf16 %v281, %v280
        %v287 = vpack.c.bf16 %v283, %v282
        %v288 = vld [vmem:[#allocation5] sm:$0xf]
        %v289 = vld [vmem:[#allocation5 + $0x4] sm:$0xf]
        %v290 = vld [vmem:[#allocation5 + $0x8] sm:$0xf]
        %v291 = vld [vmem:[#allocation5 + $0xc] sm:$0xf]
        %v292 = vld [vmem:[#allocation5 + $0x10] sm:$0xf]
        %v293 = vld [vmem:[#allocation5 + $0x14] sm:$0xf]
        %v294 = vld [vmem:[#allocation5 + $0x18] sm:$0xf]
        %v295 = vld [vmem:[#allocation5 + $0x1c] sm:$0xf]
        %v296 = vld [vmem:[%s2] sm:$0x3]
        %v297 = vlaneseq
        %v298 = vshrl.u32 %v297, 7
        %v299 = vsub.s32 0, %v298
        %v300 = vrot.slane %v296, %v299
        %v309 = vunpack.c.l.b16 %v288
        %v310 = vunpack.c.l.b16 %v289
        %v311 = vunpack.c.l.b16 %v290
        %v312 = vunpack.c.l.b16 %v291
        %v313 = vunpack.c.l.b16 %v292
        %v314 = vunpack.c.l.b16 %v293
        %v315 = vunpack.c.l.b16 %v294
        %v316 = vunpack.c.l.b16 %v295
        %v317 = vpack.c.b16 %v310, %v309
        %v318 = vpack.c.b16 %v312, %v311
        %v319 = vpack.c.b16 %v314, %v313
        %v320 = vpack.c.b16 %v316, %v315
        %vm325 = vcmask 523264
        %v327 = vsel %vm325, %v284, 0
        %v330 = vsel %vm325, %v285, 0
        %v333 = vsel %vm325, %v286, 0
        %v336 = vsel %vm325, %v287, 0
        %338 = vmatprep.subr.bf16.mxu0 0
        %339 = vmatpush1.bf16.msra.mxu0 %v317
        %340 = vmatprep.subr.bf16.mxu0 0
        %341 = vmatpush1.bf16.msra.mxu0 %v318
        %342 = vmatprep.subr.bf16.mxu0 0
        %343 = vmatpush1.bf16.msra.mxu0 %v319
        %344 = vmatprep.subr.bf16.mxu0 0
        %345 = vmatpush1.bf16.msra.mxu0 %v320
        %346 = vmatprep.subr.bf16.mxu0 0
        %347 = vmatpush1.bf16.msra.mxu0 0
        %348 = vmatprep.subr.bf16.mxu0 0
        %349 = vmatpush1.bf16.msra.mxu0 0
        %350 = vmatprep.subr.bf16.mxu0 0
        %351 = vmatpush1.bf16.msra.mxu0 0
        %352 = vmatprep.subr.bf16.mxu0 0
        %353 = vmatpush1.bf16.msra.mxu0 0
        %354 = vmatprep.subr.bf16.mxu0 0
        %355 = vmatpush1.bf16.msra.mxu0 0
        %356 = vmatprep.subr.bf16.mxu0 0
        %357 = vmatpush1.bf16.msra.mxu0 0
        %358 = vmatprep.subr.bf16.mxu0 0
        %359 = vmatpush1.bf16.msra.mxu0 0
        %360 = vmatprep.subr.bf16.mxu0 0
        %361 = vmatpush1.bf16.msra.mxu0 0
        %362 = vmatprep.subr.bf16.mxu0 0
        %363 = vmatpush1.bf16.msra.mxu0 0
        %364 = vmatprep.subr.bf16.mxu0 0
        %365 = vmatpush1.bf16.msra.mxu0 0
        %366 = vmatprep.subr.bf16.mxu0 0
        %367 = vmatpush1.bf16.msra.mxu0 0
        %368 = vmatprep.subr.bf16.mxu0 0
        %369 = vmatpush1.bf16.msra.mxu0 0
        %370 = vmatprep.mubr.bf16.mxu0 0
        %371 = vmatmul.mubr.bf16.gmra.mrb[0].mxu0 %v327
        %v372 = vpop.f32.mrb[0].mxu0
        %v373 = vadd.f32 %v300, %v372
        %v374 = vpop.f32.mrb[0].mxu0
        %v375 = vpop.f32.mrb[0].mxu0
        %v376 = vadd.f32 %v300, %v375
        %v377 = vpop.f32.mrb[0].mxu0
        %378 = vmatprep.mubr.bf16.mxu0 0
        %379 = vmatmul.mubr.bf16.gmra.mrb[0].mxu0 %v330
        %v380 = vpop.f32.mrb[0].mxu0
        %v381 = vadd.f32 %v300, %v380
        %v382 = vpop.f32.mrb[0].mxu0
        %v383 = vpop.f32.mrb[0].mxu0
        %v384 = vadd.f32 %v300, %v383
        %v385 = vpop.f32.mrb[0].mxu0
        %386 = vmatprep.mubr.bf16.mxu0 0
        %387 = vmatmul.mubr.bf16.gmra.mrb[0].mxu0 %v333
        %v388 = vpop.f32.mrb[0].mxu0
        %v389 = vadd.f32 %v300, %v388
        %v390 = vpop.f32.mrb[0].mxu0
        %v391 = vpop.f32.mrb[0].mxu0
        %v392 = vadd.f32 %v300, %v391
        %v393 = vpop.f32.mrb[0].mxu0
        %394 = vmatprep.mubr.bf16.mxu0 0
        %395 = vmatmul.mubr.bf16.gmra.mrb[0].mxu0 %v336
        %v396 = vpop.f32.mrb[0].mxu0
        %v397 = vadd.f32 %v300, %v396
        %v398 = vpop.f32.mrb[0].mxu0
        %v399 = vpop.f32.mrb[0].mxu0
        %v400 = vadd.f32 %v300, %v399
        %v401 = vpop.f32.mrb[0].mxu0
        %402 = vdwg.mxu0
        %vm403 = vcmp.ge.f32.partialorder %v373, 0.0
        %vm404 = vcmp.ge.f32.partialorder %v376, 0.0
        %vm405 = vcmp.ge.f32.partialorder %v381, 0.0
        %vm406 = vcmp.ge.f32.partialorder %v384, 0.0
        %vm407 = vcmp.ge.f32.partialorder %v389, 0.0
        %vm408 = vcmp.ge.f32.partialorder %v392, 0.0
        %vm409 = vcmp.ge.f32.partialorder %v397, 0.0
        %vm410 = vcmp.ge.f32.partialorder %v400, 0.0
        %v411 = vlaneseq
        %v412 = vshrl.u32 %v411, 7
        %v413 = vsub.s32 1, %v412
        %v414 = vrot.slane %v296, %v413
        %v415 = vmul.f32 %v414, %v373
        %v416 = vmul.f32 %v414, %v376
        %v417 = vmul.f32 %v414, %v381
        %v418 = vmul.f32 %v414, %v384
        %v419 = vmul.f32 %v414, %v389
        %v420 = vmul.f32 %v414, %v392
        %v421 = vmul.f32 %v414, %v397
        %v422 = vmul.f32 %v414, %v400
        %v423 = vsel %vm403, %v373, %v415
        %v424 = vsel %vm404, %v376, %v416
        %v425 = vsel %vm405, %v381, %v417
        %v426 = vsel %vm406, %v384, %v418
        %v427 = vsel %vm407, %v389, %v419
        %v428 = vsel %vm408, %v392, %v420
        %v429 = vsel %vm409, %v397, %v421
        %v430 = vsel %vm410, %v400, %v422
        %v431 = vpack.c.bf16 %v424, %v423
        %v432 = vpack.c.bf16 %v426, %v425
        %v433 = vpack.c.bf16 %v428, %v427
        %v434 = vpack.c.bf16 %v430, %v429
        %436 = vrot.lane.b32.xlu0 %v431, 96
        %v437 = vpop.permute.xlu0 %436
        %vm438 = vcmask 261120
        %v440 = vsel %vm438, %v431, 0
        %v443 = vsel %vm438, %v437, 0
        %445 = vmatprep.subr.bf16.mxu0 0
        %446 = vmatpush1.bf16.xpose.msra.mxu0 %v443
        %447 = vmatprep.subr.bf16.mxu0 0
        %448 = vmatpush1.bf16.xpose.msra.mxu0 0
        %449 = vmatprep.subr.bf16.mxu0 0
        %450 = vmatpush1.bf16.xpose.msra.mxu0 0
        %451 = vmatprep.subr.bf16.mxu0 0
        %452 = vmatpush1.bf16.xpose.msra.mxu0 0
        %453 = vmatprep.subr.bf16.mxu0 0
        %454 = vmatpush1.bf16.xpose.msra.mxu0 0
        %455 = vmatprep.subr.bf16.mxu0 0
        %456 = vmatpush1.bf16.xpose.msra.mxu0 0
        %457 = vmatprep.subr.bf16.mxu0 0
        %458 = vmatpush1.bf16.xpose.msra.mxu0 0
        %459 = vmatprep.subr.bf16.mxu0 0
        %460 = vmatpush1.bf16.xpose.msra.mxu0 0
        %461 = vmatprep.subr.bf16.mxu0 0
        %462 = vmatpush1.bf16.xpose.msra.mxu0 0
        %463 = vmatprep.subr.bf16.mxu0 0
        %464 = vmatpush1.bf16.xpose.msra.mxu0 0
        %465 = vmatprep.subr.bf16.mxu0 0
        %466 = vmatpush1.bf16.xpose.msra.mxu0 0
        %467 = vmatprep.subr.bf16.mxu0 0
        %468 = vmatpush1.bf16.xpose.msra.mxu0 0
        %469 = vmatprep.subr.bf16.mxu0 0
        %470 = vmatpush1.bf16.xpose.msra.mxu0 0
        %471 = vmatprep.subr.bf16.mxu0 0
        %472 = vmatpush1.bf16.xpose.msra.mxu0 0
        %473 = vmatprep.subr.bf16.mxu0 0
        %474 = vmatpush1.bf16.xpose.msra.mxu0 0
        %475 = vmatprep.subr.bf16.mxu0 0
        %476 = vmatpush1.bf16.xpose.msra.mxu0 0
        %477 = vmatprep.mubr.bf16.mxu0 0
        %478 = vmatmul.mubr.bf16.gmra.mrb[0].mxu0 %v440
        %v479 = vpop.f32.mrb[0].mxu0
        %v480 = vadd.f32 0.0, %v479
        %v481 = vpop.f32.mrb[0].mxu0
        %v482 = vpop.f32.mrb[0].mxu0
        %v483 = vadd.f32 0.0, %v482
        %v484 = vpop.f32.mrb[0].mxu0
        %485 = vdwg.mxu0
        %487 = vrot.lane.b32.xlu0 %v432, 96
        %v488 = vpop.permute.xlu0 %487
        %v490 = vsel %vm438, %v432, 0
        %v493 = vsel %vm438, %v488, 0
        %495 = vmatprep.subr.bf16.mxu0 0
        %496 = vmatpush1.bf16.xpose.msra.mxu0 %v493
        %497 = vmatprep.subr.bf16.mxu0 0
        %498 = vmatpush1.bf16.xpose.msra.mxu0 0
        %499 = vmatprep.subr.bf16.mxu0 0
        %500 = vmatpush1.bf16.xpose.msra.mxu0 0
        %501 = vmatprep.subr.bf16.mxu0 0
        %502 = vmatpush1.bf16.xpose.msra.mxu0 0
        %503 = vmatprep.subr.bf16.mxu0 0
        %504 = vmatpush1.bf16.xpose.msra.mxu0 0
        %505 = vmatprep.subr.bf16.mxu0 0
        %506 = vmatpush1.bf16.xpose.msra.mxu0 0
        %507 = vmatprep.subr.bf16.mxu0 0
        %508 = vmatpush1.bf16.xpose.msra.mxu0 0
        %509 = vmatprep.subr.bf16.mxu0 0
        %510 = vmatpush1.bf16.xpose.msra.mxu0 0
        %511 = vmatprep.subr.bf16.mxu0 0
        %512 = vmatpush1.bf16.xpose.msra.mxu0 0
        %513 = vmatprep.subr.bf16.mxu0 0
        %514 = vmatpush1.bf16.xpose.msra.mxu0 0
        %515 = vmatprep.subr.bf16.mxu0 0
        %516 = vmatpush1.bf16.xpose.msra.mxu0 0
        %517 = vmatprep.subr.bf16.mxu0 0
        %518 = vmatpush1.bf16.xpose.msra.mxu0 0
        %519 = vmatprep.subr.bf16.mxu0 0
        %520 = vmatpush1.bf16.xpose.msra.mxu0 0
        %521 = vmatprep.subr.bf16.mxu0 0
        %522 = vmatpush1.bf16.xpose.msra.mxu0 0
        %523 = vmatprep.subr.bf16.mxu0 0
        %524 = vmatpush1.bf16.xpose.msra.mxu0 0
        %525 = vmatprep.subr.bf16.mxu0 0
        %526 = vmatpush1.bf16.xpose.msra.mxu0 0
        %527 = vmatprep.mubr.bf16.mxu0 0
        %528 = vmatmul.mubr.bf16.gmra.mrb[0].mxu0 %v490
        %v529 = vpop.f32.mrb[0].mxu0
        %v530 = vadd.f32 0.0, %v529
        %v531 = vpop.f32.mrb[0].mxu0
        %v532 = vpop.f32.mrb[0].mxu0
        %v533 = vadd.f32 0.0, %v532
        %v534 = vpop.f32.mrb[0].mxu0
        %535 = vdwg.mxu0
        %537 = vrot.lane.b32.xlu0 %v433, 96
        %v538 = vpop.permute.xlu0 %537
        %v540 = vsel %vm438, %v433, 0
        %v543 = vsel %vm438, %v538, 0
        %545 = vmatprep.subr.bf16.mxu0 0
        %546 = vmatpush1.bf16.xpose.msra.mxu0 %v543
        %547 = vmatprep.subr.bf16.mxu0 0
        %548 = vmatpush1.bf16.xpose.msra.mxu0 0
        %549 = vmatprep.subr.bf16.mxu0 0
        %550 = vmatpush1.bf16.xpose.msra.mxu0 0
        %551 = vmatprep.subr.bf16.mxu0 0
        %552 = vmatpush1.bf16.xpose.msra.mxu0 0
        %553 = vmatprep.subr.bf16.mxu0 0
        %554 = vmatpush1.bf16.xpose.msra.mxu0 0
        %555 = vmatprep.subr.bf16.mxu0 0
        %556 = vmatpush1.bf16.xpose.msra.mxu0 0
        %557 = vmatprep.subr.bf16.mxu0 0
        %558 = vmatpush1.bf16.xpose.msra.mxu0 0
        %559 = vmatprep.subr.bf16.mxu0 0
        %560 = vmatpush1.bf16.xpose.msra.mxu0 0
        %561 = vmatprep.subr.bf16.mxu0 0
        %562 = vmatpush1.bf16.xpose.msra.mxu0 0
        %563 = vmatprep.subr.bf16.mxu0 0
        %564 = vmatpush1.bf16.xpose.msra.mxu0 0
        %565 = vmatprep.subr.bf16.mxu0 0
        %566 = vmatpush1.bf16.xpose.msra.mxu0 0
        %567 = vmatprep.subr.bf16.mxu0 0
        %568 = vmatpush1.bf16.xpose.msra.mxu0 0
        %569 = vmatprep.subr.bf16.mxu0 0
        %570 = vmatpush1.bf16.xpose.msra.mxu0 0
        %571 = vmatprep.subr.bf16.mxu0 0
        %572 = vmatpush1.bf16.xpose.msra.mxu0 0
        %573 = vmatprep.subr.bf16.mxu0 0
        %574 = vmatpush1.bf16.xpose.msra.mxu0 0
        %575 = vmatprep.subr.bf16.mxu0 0
        %576 = vmatpush1.bf16.xpose.msra.mxu0 0
        %577 = vmatprep.mubr.bf16.mxu0 0
        %578 = vmatmul.mubr.bf16.gmra.mrb[0].mxu0 %v540
        %v579 = vpop.f32.mrb[0].mxu0
        %v580 = vadd.f32 0.0, %v579
        %v581 = vpop.f32.mrb[0].mxu0
        %v582 = vpop.f32.mrb[0].mxu0
        %v583 = vadd.f32 0.0, %v582
        %v584 = vpop.f32.mrb[0].mxu0
        %585 = vdwg.mxu0
        %587 = vrot.lane.b32.xlu0 %v434, 96
        %v588 = vpop.permute.xlu0 %587
        %v590 = vsel %vm438, %v434, 0
        %v593 = vsel %vm438, %v588, 0
        %595 = vmatprep.subr.bf16.mxu0 0
        %596 = vmatpush1.bf16.xpose.msra.mxu0 %v593
        %597 = vmatprep.subr.bf16.mxu0 0
        %598 = vmatpush1.bf16.xpose.msra.mxu0 0
        %599 = vmatprep.subr.bf16.mxu0 0
        %600 = vmatpush1.bf16.xpose.msra.mxu0 0
        %601 = vmatprep.subr.bf16.mxu0 0
        %602 = vmatpush1.bf16.xpose.msra.mxu0 0
        %603 = vmatprep.subr.bf16.mxu0 0
        %604 = vmatpush1.bf16.xpose.msra.mxu0 0
        %605 = vmatprep.subr.bf16.mxu0 0
        %606 = vmatpush1.bf16.xpose.msra.mxu0 0
        %607 = vmatprep.subr.bf16.mxu0 0
        %608 = vmatpush1.bf16.xpose.msra.mxu0 0
        %609 = vmatprep.subr.bf16.mxu0 0
        %610 = vmatpush1.bf16.xpose.msra.mxu0 0
        %611 = vmatprep.subr.bf16.mxu0 0
        %612 = vmatpush1.bf16.xpose.msra.mxu0 0
        %613 = vmatprep.subr.bf16.mxu0 0
        %614 = vmatpush1.bf16.xpose.msra.mxu0 0
        %615 = vmatprep.subr.bf16.mxu0 0
        %616 = vmatpush1.bf16.xpose.msra.mxu0 0
        %617 = vmatprep.subr.bf16.mxu0 0
        %618 = vmatpush1.bf16.xpose.msra.mxu0 0
        %619 = vmatprep.subr.bf16.mxu0 0
        %620 = vmatpush1.bf16.xpose.msra.mxu0 0
        %621 = vmatprep.subr.bf16.mxu0 0
        %622 = vmatpush1.bf16.xpose.msra.mxu0 0
        %623 = vmatprep.subr.bf16.mxu0 0
        %624 = vmatpush1.bf16.xpose.msra.mxu0 0
        %625 = vmatprep.subr.bf16.mxu0 0
        %626 = vmatpush1.bf16.xpose.msra.mxu0 0
        %627 = vmatprep.mubr.bf16.mxu0 0
        %628 = vmatmul.mubr.bf16.gmra.mrb[0].mxu0 %v590
        %v629 = vpop.f32.mrb[0].mxu0
        %v630 = vadd.f32 0.0, %v629
        %v631 = vpop.f32.mrb[0].mxu0
        %v632 = vpop.f32.mrb[0].mxu0
        %v633 = vadd.f32 0.0, %v632
        %v634 = vpop.f32.mrb[0].mxu0
        %635 = vdwg.mxu0
        %v636 = vmul.f32 %v480, 0.17677669
        %v637 = vmul.f32 %v483, 0.17677669
        %v638 = vmul.f32 %v530, 0.17677669
        %v639 = vmul.f32 %v533, 0.17677669
        %v640 = vmul.f32 %v580, 0.17677669
        %v641 = vmul.f32 %v583, 0.17677669
        %v642 = vmul.f32 %v630, 0.17677669
        %v643 = vmul.f32 %v633, 0.17677669
        %vm644 = vcmask 130048
        %v645 = vsel %vm644, %v636, -inf
        %646 = vmax.xlane.f32.xlu0 %v645
        %v647 = vpop.xlane.xlu0 %646
        %v648 = vsel %vm644, %v637, -inf
        %649 = vmax.xlane.f32.xlu0 %v648
        %v650 = vpop.xlane.xlu0 %649
        %v651 = vsel %vm644, %v638, -inf
        %652 = vmax.xlane.f32.xlu0 %v651
        %v653 = vpop.xlane.xlu0 %652
        %v654 = vsel %vm644, %v639, -inf
        %655 = vmax.xlane.f32.xlu0 %v654
        %v656 = vpop.xlane.xlu0 %655
        %v657 = vsel %vm644, %v640, -inf
        %658 = vmax.xlane.f32.xlu0 %v657
        %v659 = vpop.xlane.xlu0 %658
        %v660 = vsel %vm644, %v641, -inf
        %661 = vmax.xlane.f32.xlu0 %v660
        %v662 = vpop.xlane.xlu0 %661
        %v663 = vsel %vm644, %v642, -inf
        %664 = vmax.xlane.f32.xlu0 %v663
        %v665 = vpop.xlane.xlu0 %664
        %v666 = vsel %vm644, %v643, -inf
        %667 = vmax.xlane.f32.xlu0 %v666
        %v668 = vpop.xlane.xlu0 %667
        %v669 = vsub.f32 %v636, %v647
        %v670 = vsub.f32 %v637, %v650
        %v671 = vsub.f32 %v638, %v653
        %v672 = vsub.f32 %v639, %v656
        %v673 = vsub.f32 %v640, %v659
        %v674 = vsub.f32 %v641, %v662
        %v675 = vsub.f32 %v642, %v665
        %v676 = vsub.f32 %v643, %v668
        %v677 = vmul.f32 %v669, 1.442695
        %v678 = vpow.pop %v677
        %v679 = vmul.f32 %v670, 1.442695
        %v680 = vpow.pop %v679
        %v681 = vmul.f32 %v671, 1.442695
        %v682 = vpow.pop %v681
        %v683 = vmul.f32 %v672, 1.442695
        %v684 = vpow.pop %v683
        %v685 = vmul.f32 %v673, 1.442695
        %v686 = vpow.pop %v685
        %v687 = vmul.f32 %v674, 1.442695
        %v688 = vpow.pop %v687
        %v689 = vmul.f32 %v675, 1.442695
        %v690 = vpow.pop %v689
        %v691 = vmul.f32 %v676, 1.442695
        %v692 = vpow.pop %v691
        %v693 = vsel %vm644, %v678, 0.0
        %694 = vadd.xlane.f32.xlu0 %v693
        %v695 = vpop.xlane.xlu0 %694
        %v696 = vsel %vm644, %v680, 0.0
        %697 = vadd.xlane.f32.xlu0 %v696
        %v698 = vpop.xlane.xlu0 %697
        %v699 = vsel %vm644, %v682, 0.0
        %700 = vadd.xlane.f32.xlu0 %v699
        %v701 = vpop.xlane.xlu0 %700
        %v702 = vsel %vm644, %v684, 0.0
        %703 = vadd.xlane.f32.xlu0 %v702
        %v704 = vpop.xlane.xlu0 %703
        %v705 = vsel %vm644, %v686, 0.0
        %706 = vadd.xlane.f32.xlu0 %v705
        %v707 = vpop.xlane.xlu0 %706
        %v708 = vsel %vm644, %v688, 0.0
        %709 = vadd.xlane.f32.xlu0 %v708
        %v710 = vpop.xlane.xlu0 %709
        %v711 = vsel %vm644, %v690, 0.0
        %712 = vadd.xlane.f32.xlu0 %v711
        %v713 = vpop.xlane.xlu0 %712
        %v714 = vsel %vm644, %v692, 0.0
        %715 = vadd.xlane.f32.xlu0 %v714
        %v716 = vpop.xlane.xlu0 %715
        %v717 = vrcp.pop %v695
        %v718 = vrcp.pop %v698
        %v719 = vrcp.pop %v701
        %v720 = vrcp.pop %v704
        %v721 = vrcp.pop %v707
        %v722 = vrcp.pop %v710
        %v723 = vrcp.pop %v713
        %v724 = vrcp.pop %v716
        %v725 = vmul.f32 %v678, %v717
        %v726 = vmul.f32 %v680, %v718
        %v727 = vmul.f32 %v682, %v719
        %v728 = vmul.f32 %v684, %v720
        %v729 = vmul.f32 %v686, %v721
        %v730 = vmul.f32 %v688, %v722
        %v731 = vmul.f32 %v690, %v723
        %v732 = vmul.f32 %v692, %v724
        %v733 = vpack.c.bf16 %v726, %v725
        %v734 = vpack.c.bf16 %v728, %v727
        %v735 = vpack.c.bf16 %v730, %v729
        %v736 = vpack.c.bf16 %v732, %v731
        %737 = vrot.lane.b32.xlu0 %v431, 64
        %v738 = vpop.permute.xlu0 %737
        %v741 = vsel %vm644, %v733, 0
        %743 = vmatprep.subr.bf16.mxu0 0
        %744 = vmatpush1.bf16.msra.mxu0 %v738
        %745 = vmatprep.subr.bf16.mxu0 0
        %746 = vmatpush1.bf16.msra.mxu0 0
        %747 = vmatprep.subr.bf16.mxu0 0
        %748 = vmatpush1.bf16.msra.mxu0 0
        %749 = vmatprep.subr.bf16.mxu0 0
        %750 = vmatpush1.bf16.msra.mxu0 0
        %751 = vmatprep.subr.bf16.mxu0 0
        %752 = vmatpush1.bf16.msra.mxu0 0
        %753 = vmatprep.subr.bf16.mxu0 0
        %754 = vmatpush1.bf16.msra.mxu0 0
        %755 = vmatprep.subr.bf16.mxu0 0
        %756 = vmatpush1.bf16.msra.mxu0 0
        %757 = vmatprep.subr.bf16.mxu0 0
        %758 = vmatpush1.bf16.msra.mxu0 0
        %759 = vmatprep.subr.bf16.mxu0 0
        %760 = vmatpush1.bf16.msra.mxu0 0
        %761 = vmatprep.subr.bf16.mxu0 0
        %762 = vmatpush1.bf16.msra.mxu0 0
        %763 = vmatprep.subr.bf16.mxu0 0
        %764 = vmatpush1.bf16.msra.mxu0 0
        %765 = vmatprep.subr.bf16.mxu0 0
        %766 = vmatpush1.bf16.msra.mxu0 0
        %767 = vmatprep.subr.bf16.mxu0 0
        %768 = vmatpush1.bf16.msra.mxu0 0
        %769 = vmatprep.subr.bf16.mxu0 0
        %770 = vmatpush1.bf16.msra.mxu0 0
        %771 = vmatprep.subr.bf16.mxu0 0
        %772 = vmatpush1.bf16.msra.mxu0 0
        %773 = vmatprep.subr.bf16.mxu0 0
        %774 = vmatpush1.bf16.msra.mxu0 0
        %775 = vmatprep.mubr.bf16.mxu0 0
        %776 = vmatmul.mubr.bf16.gmra.mrb[0].mxu0 %v741
        %v777 = vpop.f32.mrb[0].mxu0
        %v778 = vadd.f32 0.0, %v777
        %v779 = vpop.f32.mrb[0].mxu0
        %v780 = vpop.f32.mrb[0].mxu0
        %v781 = vadd.f32 0.0, %v780
        %v782 = vpop.f32.mrb[0].mxu0
        %783 = vdwg.mxu0
        %784 = vrot.lane.b32.xlu0 %v432, 64
        %v785 = vpop.permute.xlu0 %784
        %v788 = vsel %vm644, %v734, 0
        %790 = vmatprep.subr.bf16.mxu0 0
        %791 = vmatpush1.bf16.msra.mxu0 %v785
        %792 = vmatprep.subr.bf16.mxu0 0
        %793 = vmatpush1.bf16.msra.mxu0 0
        %794 = vmatprep.subr.bf16.mxu0 0
        %795 = vmatpush1.bf16.msra.mxu0 0
        %796 = vmatprep.subr.bf16.mxu0 0
        %797 = vmatpush1.bf16.msra.mxu0 0
        %798 = vmatprep.subr.bf16.mxu0 0
        %799 = vmatpush1.bf16.msra.mxu0 0
        %800 = vmatprep.subr.bf16.mxu0 0
        %801 = vmatpush1.bf16.msra.mxu0 0
        %802 = vmatprep.subr.bf16.mxu0 0
        %803 = vmatpush1.bf16.msra.mxu0 0
        %804 = vmatprep.subr.bf16.mxu0 0
        %805 = vmatpush1.bf16.msra.mxu0 0
        %806 = vmatprep.subr.bf16.mxu0 0
        %807 = vmatpush1.bf16.msra.mxu0 0
        %808 = vmatprep.subr.bf16.mxu0 0
        %809 = vmatpush1.bf16.msra.mxu0 0
        %810 = vmatprep.subr.bf16.mxu0 0
        %811 = vmatpush1.bf16.msra.mxu0 0
        %812 = vmatprep.subr.bf16.mxu0 0
        %813 = vmatpush1.bf16.msra.mxu0 0
        %814 = vmatprep.subr.bf16.mxu0 0
        %815 = vmatpush1.bf16.msra.mxu0 0
        %816 = vmatprep.subr.bf16.mxu0 0
        %817 = vmatpush1.bf16.msra.mxu0 0
        %818 = vmatprep.subr.bf16.mxu0 0
        %819 = vmatpush1.bf16.msra.mxu0 0
        %820 = vmatprep.subr.bf16.mxu0 0
        %821 = vmatpush1.bf16.msra.mxu0 0
        %822 = vmatprep.mubr.bf16.mxu0 0
        %823 = vmatmul.mubr.bf16.gmra.mrb[0].mxu0 %v788
        %v824 = vpop.f32.mrb[0].mxu0
        %v825 = vadd.f32 0.0, %v824
        %v826 = vpop.f32.mrb[0].mxu0
        %v827 = vpop.f32.mrb[0].mxu0
        %v828 = vadd.f32 0.0, %v827
        %v829 = vpop.f32.mrb[0].mxu0
        %830 = vdwg.mxu0
        %831 = vrot.lane.b32.xlu0 %v433, 64
        %v832 = vpop.permute.xlu0 %831
        %v835 = vsel %vm644, %v735, 0
        %837 = vmatprep.subr.bf16.mxu0 0
        %838 = vmatpush1.bf16.msra.mxu0 %v832
        %839 = vmatprep.subr.bf16.mxu0 0
        %840 = vmatpush1.bf16.msra.mxu0 0
        %841 = vmatprep.subr.bf16.mxu0 0
        %842 = vmatpush1.bf16.msra.mxu0 0
        %843 = vmatprep.subr.bf16.mxu0 0
        %844 = vmatpush1.bf16.msra.mxu0 0
        %845 = vmatprep.subr.bf16.mxu0 0
        %846 = vmatpush1.bf16.msra.mxu0 0
        %847 = vmatprep.subr.bf16.mxu0 0
        %848 = vmatpush1.bf16.msra.mxu0 0
        %849 = vmatprep.subr.bf16.mxu0 0
        %850 = vmatpush1.bf16.msra.mxu0 0
        %851 = vmatprep.subr.bf16.mxu0 0
        %852 = vmatpush1.bf16.msra.mxu0 0
        %853 = vmatprep.subr.bf16.mxu0 0
        %854 = vmatpush1.bf16.msra.mxu0 0
        %855 = vmatprep.subr.bf16.mxu0 0
        %856 = vmatpush1.bf16.msra.mxu0 0
        %857 = vmatprep.subr.bf16.mxu0 0
        %858 = vmatpush1.bf16.msra.mxu0 0
        %859 = vmatprep.subr.bf16.mxu0 0
        %860 = vmatpush1.bf16.msra.mxu0 0
        %861 = vmatprep.subr.bf16.mxu0 0
        %862 = vmatpush1.bf16.msra.mxu0 0
        %863 = vmatprep.subr.bf16.mxu0 0
        %864 = vmatpush1.bf16.msra.mxu0 0
        %865 = vmatprep.subr.bf16.mxu0 0
        %866 = vmatpush1.bf16.msra.mxu0 0
        %867 = vmatprep.subr.bf16.mxu0 0
        %868 = vmatpush1.bf16.msra.mxu0 0
        %869 = vmatprep.mubr.bf16.mxu0 0
        %870 = vmatmul.mubr.bf16.gmra.mrb[0].mxu0 %v835
        %v871 = vpop.f32.mrb[0].mxu0
        %v872 = vadd.f32 0.0, %v871
        %v873 = vpop.f32.mrb[0].mxu0
        %v874 = vpop.f32.mrb[0].mxu0
        %v875 = vadd.f32 0.0, %v874
        %v876 = vpop.f32.mrb[0].mxu0
        %877 = vdwg.mxu0
        %878 = vrot.lane.b32.xlu0 %v434, 64
        %v879 = vpop.permute.xlu0 %878
        %v882 = vsel %vm644, %v736, 0
        %884 = vmatprep.subr.bf16.mxu0 0
        %885 = vmatpush1.bf16.msra.mxu0 %v879
        %886 = vmatprep.subr.bf16.mxu0 0
        %887 = vmatpush1.bf16.msra.mxu0 0
        %888 = vmatprep.subr.bf16.mxu0 0
        %889 = vmatpush1.bf16.msra.mxu0 0
        %890 = vmatprep.subr.bf16.mxu0 0
        %891 = vmatpush1.bf16.msra.mxu0 0
        %892 = vmatprep.subr.bf16.mxu0 0
        %893 = vmatpush1.bf16.msra.mxu0 0
        %894 = vmatprep.subr.bf16.mxu0 0
        %895 = vmatpush1.bf16.msra.mxu0 0
        %896 = vmatprep.subr.bf16.mxu0 0
        %897 = vmatpush1.bf16.msra.mxu0 0
        %898 = vmatprep.subr.bf16.mxu0 0
        %899 = vmatpush1.bf16.msra.mxu0 0
        %900 = vmatprep.subr.bf16.mxu0 0
        %901 = vmatpush1.bf16.msra.mxu0 0
        %902 = vmatprep.subr.bf16.mxu0 0
        %903 = vmatpush1.bf16.msra.mxu0 0
        %904 = vmatprep.subr.bf16.mxu0 0
        %905 = vmatpush1.bf16.msra.mxu0 0
        %906 = vmatprep.subr.bf16.mxu0 0
        %907 = vmatpush1.bf16.msra.mxu0 0
        %908 = vmatprep.subr.bf16.mxu0 0
        %909 = vmatpush1.bf16.msra.mxu0 0
        %910 = vmatprep.subr.bf16.mxu0 0
        %911 = vmatpush1.bf16.msra.mxu0 0
        %912 = vmatprep.subr.bf16.mxu0 0
        %913 = vmatpush1.bf16.msra.mxu0 0
        %914 = vmatprep.subr.bf16.mxu0 0
        %915 = vmatpush1.bf16.msra.mxu0 0
        %916 = vmatprep.mubr.bf16.mxu0 0
        %917 = vmatmul.mubr.bf16.gmra.mrb[0].mxu0 %v882
        %v918 = vpop.f32.mrb[0].mxu0
        %v919 = vadd.f32 0.0, %v918
        %v920 = vpop.f32.mrb[0].mxu0
        %v921 = vpop.f32.mrb[0].mxu0
        %v922 = vadd.f32 0.0, %v921
        %v923 = vpop.f32.mrb[0].mxu0
        %924 = vdwg.mxu0
        %v925 = vpack.c.bf16 %v781, %v778
        %v926 = vpack.c.bf16 %v828, %v825
        %v927 = vpack.c.bf16 %v875, %v872
        %v928 = vpack.c.bf16 %v922, %v919
        %v929 = vld [vmem:[#allocation7] sm:$0xf]
        %v930 = vld [vmem:[#allocation7 + $0x4] sm:$0xf]
        %v931 = vld [vmem:[#allocation7 + $0x8] sm:$0xf]
        %v932 = vld [vmem:[#allocation7 + $0xc] sm:$0xf]
        %v933 = vld [vmem:[%s4] sm:$0x3]
        %v934 = vlaneseq
        %v935 = vshrl.u32 %v934, 7
        %v936 = vsub.s32 0, %v935
        %v937 = vrot.slane %v933, %v936
        %v942 = vunpack.c.l.b16 %v929
        %v943 = vunpack.c.l.b16 %v930
        %v944 = vunpack.c.l.b16 %v931
        %v945 = vunpack.c.l.b16 %v932
        %v946 = vpack.c.b16 %v943, %v942
        %v947 = vpack.c.b16 %v945, %v944
        %v951 = vsel %vm438, %v925, 0
        %v954 = vsel %vm438, %v926, 0
        %v957 = vsel %vm438, %v927, 0
        %v960 = vsel %vm438, %v928, 0
        %962 = vmatprep.subr.bf16.mxu0 0
        %963 = vmatpush1.bf16.msra.mxu0 %v946
        %964 = vmatprep.subr.bf16.mxu0 0
        %965 = vmatpush1.bf16.msra.mxu0 %v947
        %966 = vmatprep.subr.bf16.mxu0 0
        %967 = vmatpush1.bf16.msra.mxu0 0
        %968 = vmatprep.subr.bf16.mxu0 0
        %969 = vmatpush1.bf16.msra.mxu0 0
        %970 = vmatprep.subr.bf16.mxu0 0
        %971 = vmatpush1.bf16.msra.mxu0 0
        %972 = vmatprep.subr.bf16.mxu0 0
        %973 = vmatpush1.bf16.msra.mxu0 0
        %974 = vmatprep.subr.bf16.mxu0 0
        %975 = vmatpush1.bf16.msra.mxu0 0
        %976 = vmatprep.subr.bf16.mxu0 0
        %977 = vmatpush1.bf16.msra.mxu0 0
        %978 = vmatprep.subr.bf16.mxu0 0
        %979 = vmatpush1.bf16.msra.mxu0 0
        %980 = vmatprep.subr.bf16.mxu0 0
        %981 = vmatpush1.bf16.msra.mxu0 0
        %982 = vmatprep.subr.bf16.mxu0 0
        %983 = vmatpush1.bf16.msra.mxu0 0
        %984 = vmatprep.subr.bf16.mxu0 0
        %985 = vmatpush1.bf16.msra.mxu0 0
        %986 = vmatprep.subr.bf16.mxu0 0
        %987 = vmatpush1.bf16.msra.mxu0 0
        %988 = vmatprep.subr.bf16.mxu0 0
        %989 = vmatpush1.bf16.msra.mxu0 0
        %990 = vmatprep.subr.bf16.mxu0 0
        %991 = vmatpush1.bf16.msra.mxu0 0
        %992 = vmatprep.subr.bf16.mxu0 0
        %993 = vmatpush1.bf16.msra.mxu0 0
        %994 = vmatprep.mubr.bf16.mxu0 0
        %995 = vmatmul.mubr.bf16.gmra.mrb[0].mxu0 %v951
        %v996 = vpop.f32.mrb[0].mxu0
        %v997 = vadd.f32 %v937, %v996
        %v998 = vpop.f32.mrb[0].mxu0
        %v999 = vpop.f32.mrb[0].mxu0
        %v1000 = vadd.f32 %v937, %v999
        %v1001 = vpop.f32.mrb[0].mxu0
        %1002 = vmatprep.mubr.bf16.mxu0 0
        %1003 = vmatmul.mubr.bf16.gmra.mrb[0].mxu0 %v954
        %v1004 = vpop.f32.mrb[0].mxu0
        %v1005 = vadd.f32 %v937, %v1004
        %v1006 = vpop.f32.mrb[0].mxu0
        %v1007 = vpop.f32.mrb[0].mxu0
        %v1008 = vadd.f32 %v937, %v1007
        %v1009 = vpop.f32.mrb[0].mxu0
        %1010 = vmatprep.mubr.bf16.mxu0 0
        %1011 = vmatmul.mubr.bf16.gmra.mrb[0].mxu0 %v957
        %v1012 = vpop.f32.mrb[0].mxu0
        %v1013 = vadd.f32 %v937, %v1012
        %v1014 = vpop.f32.mrb[0].mxu0
        %v1015 = vpop.f32.mrb[0].mxu0
        %v1016 = vadd.f32 %v937, %v1015
        %v1017 = vpop.f32.mrb[0].mxu0
        %1018 = vmatprep.mubr.bf16.mxu0 0
        %1019 = vmatmul.mubr.bf16.gmra.mrb[0].mxu0 %v960
        %v1020 = vpop.f32.mrb[0].mxu0
        %v1021 = vadd.f32 %v937, %v1020
        %v1022 = vpop.f32.mrb[0].mxu0
        %v1023 = vpop.f32.mrb[0].mxu0
        %v1024 = vadd.f32 %v937, %v1023
        %v1025 = vpop.f32.mrb[0].mxu0
        %1026 = vdwg.mxu0
        %vm1027 = vcmp.ge.f32.partialorder %v997, 0.0
        %vm1028 = vcmp.ge.f32.partialorder %v1000, 0.0
        %vm1029 = vcmp.ge.f32.partialorder %v1005, 0.0
        %vm1030 = vcmp.ge.f32.partialorder %v1008, 0.0
        %vm1031 = vcmp.ge.f32.partialorder %v1013, 0.0
        %vm1032 = vcmp.ge.f32.partialorder %v1016, 0.0
        %vm1033 = vcmp.ge.f32.partialorder %v1021, 0.0
        %vm1034 = vcmp.ge.f32.partialorder %v1024, 0.0
        %v1035 = vlaneseq
        %v1036 = vshrl.u32 %v1035, 7
        %v1037 = vsub.s32 1, %v1036
        %v1038 = vrot.slane %v933, %v1037
        %v1039 = vmul.f32 %v1038, %v997
        %v1040 = vmul.f32 %v1038, %v1000
        %v1041 = vmul.f32 %v1038, %v1005
        %v1042 = vmul.f32 %v1038, %v1008
        %v1043 = vmul.f32 %v1038, %v1013
        %v1044 = vmul.f32 %v1038, %v1016
        %v1045 = vmul.f32 %v1038, %v1021
        %v1046 = vmul.f32 %v1038, %v1024
        %v1047 = vsel %vm1027, %v997, %v1039
        %v1048 = vsel %vm1028, %v1000, %v1040
        %v1049 = vsel %vm1029, %v1005, %v1041
        %v1050 = vsel %vm1030, %v1008, %v1042
        %v1051 = vsel %vm1031, %v1013, %v1043
        %v1052 = vsel %vm1032, %v1016, %v1044
        %v1053 = vsel %vm1033, %v1021, %v1045
        %v1054 = vsel %vm1034, %v1024, %v1046
        %v1055 = vadd.f32 %v1047, %v276
        %v1056 = vadd.f32 %v1048, %v277
        %v1057 = vadd.f32 %v1049, %v278
        %v1058 = vadd.f32 %v1050, %v279
        %v1059 = vadd.f32 %v1051, %v280
        %v1060 = vadd.f32 %v1052, %v281
        %v1061 = vadd.f32 %v1053, %v282
        %v1062 = vadd.f32 %v1054, %v283
        %1063 = vst.msk [vmem:[%s272] sm:$0xff] %vm325, %v1055
        %1064 = vst.msk [vmem:[%s272 + $0x8] sm:$0xff] %vm325, %v1056
        %1065 = vst.msk [vmem:[%s272 + $0x10] sm:$0xff] %vm325, %v1057
        %1066 = vst.msk [vmem:[%s272 + $0x18] sm:$0xff] %vm325, %v1058
        %1067 = vst.msk [vmem:[%s272 + $0x20] sm:$0xff] %vm325, %v1059
        %1068 = vst.msk [vmem:[%s272 + $0x28] sm:$0xff] %vm325, %v1060
        %1069 = vst.msk [vmem:[%s272 + $0x30] sm:$0xff] %vm325, %v1061
        %1070 = vst.msk [vmem:[%s272 + $0x38] sm:$0xff] %vm325, %v1062
        %s1071 = sand.u32 %s141, 1
        %s1072 = scalar_lea.sflag [#allocation4], %s1071
        %s1073 = sand.u32 %s141, 1
        %s1074 = smul.addr %s1073, 64
        %s1075 = scalar_lea.vmem [#allocation8], %s1074
        // Predicated region
        $region53: #{tpu_custom_call.1} parent=39 // pred_check
          %p1076 = pneg %p151
        $region54: #{tpu_custom_call.1} parent=39 // pred_check_branch
          %1078 = sbr.rel (%p1076) target = $region56
        $region55: #{tpu_custom_call.1} parent=39 // pred_region
          %s1079 = smul.u32 4, %s23
          %s1081 = ssub.s32 1024, 1024
          %1082 = vsyncadd %s1072, %s1081
          %s1083 = smul.addr %s1079, 2
          %s1084 = smul.addr %s1083, 128
          %s1085 = scalar_lea.hbm %s5, %s1084
          %s1086 = sshll.u32 %s1075, 4
          %s1087 = int_to_ptr.vmem [resolvable:$true] %s1086
          %1092 = dma.vmem_to_hbm [thread:$0]  %s1087, 1024, %s1085, %s1072, 128, 128, 8
        $region56: #{tpu_custom_call.1} parent=39 // pred_fallthru
          _
      $region40: #{tpu_custom_call.1} parent=5 // pred_fallthru
        _
      %p1093 = scmp.le.s32.totalorder 2, %s18
      // Predicated region
      $region57: #{tpu_custom_call.1} parent=5 // pred_check
        %p1094 = pneg %p1093
      $region58: #{tpu_custom_call.1} parent=5 // pred_check_branch
        %1096 = sbr.rel (%p1094) target = $region60
      $region59: #{tpu_custom_call.1} parent=5 // pred_region
        %s1097 = ssub.s32 %s18, 2
        // Predicated region
        $region61: #{tpu_custom_call.1} parent=59 // pred_check
          %p1098 = pneg %p157
        $region62: #{tpu_custom_call.1} parent=59 // pred_check_branch
          %1100 = sbr.rel (%p1098) target = $region64
        $region63: #{tpu_custom_call.1} parent=59 // pred_region
          %s1101 = sand.u32 %s142, 1
          %s1102 = scalar_lea.sflag [#allocation4], %s1101
          %s1103 = sand.u32 %s142, 1
          %s1104 = smul.addr %s1103, 64
          %s1105 = scalar_lea.vmem [#allocation8], %s1104
          %1106 = dma.done %s1102, 1024
        $region64: #{tpu_custom_call.1} parent=59 // pred_fallthru
          _
      $region60: #{tpu_custom_call.1} parent=5 // pred_fallthru
        _
    $region6: #{tpu_custom_call.1} parent=1 // loop_footer
      %s22 = sadd.s32 1, %s18
    $region7: #{tpu_custom_call.1} parent=1 // loop_footer_branch
      %17 = sbr.rel target = $region3
    $region8: #{tpu_custom_call.1} parent=1 // loop_exit
      _
    %1107 = vsyncpa [#allocation3], 1
    %s1108 = scalar_lea.sflag [#allocation3], 1
    %1109 = vsyncpa %s1108, 1
    %1110 = vsyncpa [#allocation6], 1
    %1111 = vsyncpa [#allocation4], 1
    %s1112 = scalar_lea.sflag [#allocation4], 1
    %1113 = vsyncpa %s1112, 1

</llo_original>
